<compile_context>
chip_gen: v7x
topology: tpu7x:2x2x1
jax: 0.10.0
libtpu: 0.0.40
codegen_flags: <defaults>
</compile_context>

<pallas_src>
import math
import functools

import jax
import jax.numpy as jnp
from jax.experimental import pallas as pl
from jax.experimental.pallas import tpu as pltpu

_LANES = 128


def _prior_sup_kernel(z_ref, o_ref, *, c_z2, c_mm):
    """z_ref: (num_sim, tile_rows, 128) block; o_ref: (1, 8, 128) partial sums.

    Per flattened column j (one (b, d) pair):
      contrib[j] = c_z2 * sum_s z^2  +  c_mm * (sum_s z)^2
    which equals log_p_z_y[j] (+ log_p_y[j] for the gaussian prior).
    """
    z = z_ref[...].astype(jnp.float32)            # (S, T, 128), cast on vregs
    sum_z = jnp.sum(z, axis=0)                    # (T, 128)  VPU adds over leading dim
    sum_z2 = jnp.sum(z * z, axis=0)               # (T, 128)
    contrib = c_z2 * sum_z2 + c_mm * (sum_z * sum_z)   # (T, 128)

    t = contrib.shape[0]
    # Fold sublane groups (tile-aligned reshape) -> (1, 8, 128) partial, VPU adds.
    o_ref[...] = jnp.sum(contrib.reshape(1, t // 8, 8, _LANES), axis=1)


def prior_sup_forward(z, *, num_sim, var_z_y=1.0, num_data=50000,
                      p_y_prior="gaussian", tile_rows=None):
    """Pallas implementation of Prior_Sup.forward (returns the scalar sum)."""
    assert num_sim > 1, "Self-sup not going to work without augmentations"
    N = z.shape[0]
    assert N % num_sim == 0, "leading dim must be divisible by num_sim"
    S = num_sim
    B = N // S
    # TODO(synk): torch's forward sums only dims (0,1); for multi-dim features
    # it returns a (H, W)-shaped tensor.  Here features are flattened and the
    # full scalar sum is returned (exact match for the usual 2-D latent z).
    D = int(math.prod(z.shape[1:])) if z.ndim > 1 else 1
    M = B * D

    itemsize = jnp.dtype(z.dtype).itemsize
    rows = (M + _LANES - 1) // _LANES           # 128-lane rows needed for B*D

    # Tile sizing: ~2 MiB of real data per input block (double-buffered ->
    # ~4 MiB VMEM), multiple of 16 sublanes (covers f32 and bf16 packing).
    if tile_rows is None:
        target_bytes = 2 * 1024 * 1024
        tr = max(16, target_bytes // (S * _LANES * itemsize))
        tr = (int(tr) // 16) * 16
        tile_rows = min(tr, ((rows + 15) // 16) * 16)
    tile_rows = max(16, (int(tile_rows) // 16) * 16)

    rows_padded = ((rows + tile_rows - 1) // tile_rows) * tile_rows
    num_tiles = rows_padded // tile_rows
    Mp = rows_padded * _LANES

    # Glue (wrapper-side layout only, native dtype, no f32 copy):
    #   (B*S, D) -> (B, S, D) -> (S, B, D) -> (S, B*D) -> pad -> (S, rows, 128)
    z3 = z.reshape(B, S, D)
    zt = jnp.transpose(z3, (1, 0, 2)).reshape(S, M)
    if Mp != M:
        zt = jnp.pad(zt, ((0, 0), (0, Mp - M)))   # zero columns contribute 0
    zin = zt.reshape(S, rows_padded, _LANES)

    # Trace-time constants (no per-element divide in the kernel).
    inv_var = 1.0 / float(var_z_y)
    c_z2 = -0.5 * inv_var
    c_mean = 0.5 * inv_var * S - (0.5 if p_y_prior == "gaussian" else 0.0)
    c_mm = c_mean / float(S * S)                  # applied to (sum_z)^2

    kernel = functools.partial(_prior_sup_kernel, c_z2=c_z2, c_mm=c_mm)

    partials = pl.pallas_call(
        kernel,
        out_shape=jax.ShapeDtypeStruct((num_tiles, 8, _LANES), jnp.float32),
        grid_spec=pltpu.PrefetchScalarGridSpec(
            num_scalar_prefetch=0,
            grid=(num_tiles,),
            # Leading dim = full num_sim; last two dims (tile_rows, 128) are
            # (8,128)-aligned -> dense vregs / dense VMEM blocks.
            in_specs=[pl.BlockSpec((S, tile_rows, _LANES), lambda i: (0, i, 0))],
            # Per-step partial block -> no serial accumulator, grid can be
            # megacore-sharded on v7x.
            out_specs=pl.BlockSpec((1, 8, _LANES), lambda i: (i, 0, 0)),
        ),
        compiler_params=pltpu.CompilerParams(
            dimension_semantics=("parallel",),
            vmem_limit_bytes=32 * 1024 * 1024,
        ),
    )(zin)

    total = jnp.sum(partials)
    if p_y_prior == "uniform":
        # log_p_y = +log(num_data) added per (b, d) element (matches the
        # reference sign; see correctness note about the original module).
        total = total + jnp.float32(B * D * math.log(num_data))
    return total


def _reference_forward(z, *, num_sim, var_z_y=1.0, num_data=50000,
                       p_y_prior="gaussian"):
    """Pure-JAX reference matching the PyTorch module (2-D z)."""
    z = z.reshape(-1, num_sim, *z.shape[1:]).astype(jnp.float32)
    c_means = jnp.mean(z, axis=1, keepdims=True)
    log_p_z_y = -0.5 * jnp.sum(jnp.square(z - c_means) / var_z_y, axis=1)
    if p_y_prior == "uniform":
        log_p_y = math.log(num_data)
    else:
        log_p_y = -0.5 * jnp.sum(jnp.square(c_means), axis=1)
    return jnp.sum(log_p_z_y + log_p_y)


if __name__ == "__main__":
    key = jax.random.PRNGKey(0)

    # Small config consistent with the module: z is (B*num_sim, D).
    num_sim, B, D = 2, 4, 32
    z = jax.random.normal(key, (B * num_sim, D), dtype=jnp.float32)

    out = jax.block_until_ready(
        prior_sup_forward(z, num_sim=num_sim, var_z_y=1.0, p_y_prior="gaussian"))
    ref = jax.block_until_ready(
        _reference_forward(z, num_sim=num_sim, var_z_y=1.0, p_y_prior="gaussian"))
    assert jnp.allclose(out, ref, rtol=1e-4, atol=1e-4), (out, ref)

    # Exercise the multi-tile / parallel-partials path and var_z_y != 1.
    num_sim2, B2, D2 = 3, 32, 96
    z2 = jax.random.normal(jax.random.PRNGKey(0), (B2 * num_sim2, D2),
                           dtype=jnp.float32)
    out2 = jax.block_until_ready(
        prior_sup_forward(z2, num_sim=num_sim2, var_z_y=2.0,
                          p_y_prior="gaussian", tile_rows=16))
    ref2 = jax.block_until_ready(
        _reference_forward(z2, num_sim=num_sim2, var_z_y=2.0,
                           p_y_prior="gaussian"))
    assert jnp.allclose(out2, ref2, rtol=1e-4, atol=1e-4), (out2, ref2)

    # Uniform-prior branch.
    out3 = jax.block_until_ready(
        prior_sup_forward(z2, num_sim=num_sim2, var_z_y=1.0, num_data=50000,
                          p_y_prior="uniform", tile_rows=16))
    ref3 = jax.block_until_ready(
        _reference_forward(z2, num_sim=num_sim2, var_z_y=1.0, num_data=50000,
                           p_y_prior="uniform"))
    assert jnp.allclose(out3, ref3, rtol=1e-4, atol=1e-4), (out3, ref3)

    print("KERNEL_OK")
</pallas_src>

<mosaic_0001>
module attributes {stable_mosaic.version = 11 : i64} {
  func.func @_prior_sup_kernel(%arg0: i32, %arg1: memref<2x16x128xf32, #tpu.memory_space<vmem>>, %arg2: memref<1x8x128xf32, #tpu.memory_space<vmem>>) attributes {dimension_semantics = [#tpu.dimension_semantics<parallel>], iteration_bounds = array<i64: 1>, scalar_prefetch = 0 : i64, scratch_operands = 0 : i64, tpu.core_type = #tpu.core_type<tc>, window_params = [{transform_indices = @transform_0, window_bounds = array<i64: 2, 16, 128>}, {transform_indices = @transform_1, window_bounds = array<i64: 1, 8, 128>}]} {
    %c0 = arith.constant 0 : index
    %c0_0 = arith.constant 0 : index
    %c0_1 = arith.constant 0 : index
    %0 = vector.load %arg1[%c0, %c0_0, %c0_1] : memref<2x16x128xf32, #tpu.memory_space<vmem>>, vector<2x16x128xf32>
    %cst = arith.constant dense<0.000000e+00> : vector<16x128xf32>
    %1 = vector.multi_reduction <add>, %0, %cst [0] : vector<2x16x128xf32> to vector<16x128xf32>
    %2 = arith.mulf %0, %0 : vector<2x16x128xf32>
    %cst_2 = arith.constant dense<0.000000e+00> : vector<16x128xf32>
    %3 = vector.multi_reduction <add>, %2, %cst_2 [0] : vector<2x16x128xf32> to vector<16x128xf32>
    %cst_3 = arith.constant -5.000000e-01 : f32
    %4 = vector.broadcast %cst_3 : f32 to vector<16x128xf32>
    %5 = arith.mulf %4, %3 : vector<16x128xf32>
    %6 = arith.mulf %1, %1 : vector<16x128xf32>
    %cst_4 = arith.constant 1.250000e-01 : f32
    %7 = vector.broadcast %cst_4 : f32 to vector<16x128xf32>
    %8 = arith.mulf %7, %6 : vector<16x128xf32>
    %9 = arith.addf %5, %8 : vector<16x128xf32>
    %10 = vector.shape_cast %9 : vector<16x128xf32> to vector<1x2x8x128xf32>
    %cst_5 = arith.constant dense<0.000000e+00> : vector<1x8x128xf32>
    %11 = vector.multi_reduction <add>, %10, %cst_5 [1] : vector<1x2x8x128xf32> to vector<1x8x128xf32>
    %c0_6 = arith.constant 0 : index
    %c0_7 = arith.constant 0 : index
    %c0_8 = arith.constant 0 : index
    %12 = vector.load %arg2[%c0_6, %c0_7, %c0_8] : memref<1x8x128xf32, #tpu.memory_space<vmem>>, vector<1x8x128xf32>
    tpu.vector_store %arg2[%c0_6, %c0_7, %c0_8], %11 {strides = array<i32>} : memref<1x8x128xf32, #tpu.memory_space<vmem>>, vector<1x8x128xf32>,
    return
  }
  func.func @transform_0(%arg0: i32) -> (i32, i32, i32) {
    %c0_i32 = arith.constant 0 : i32
    %c0_i32_0 = arith.constant 0 : i32
    %c0_i32_1 = arith.constant 0 : i32
    return %c0_i32, %arg0, %c0_i32_0 : i32, i32, i32
  }
  func.func @transform_1(%arg0: i32) -> (i32, i32, i32) {
    %c0_i32 = arith.constant 0 : i32
    %c0_i32_0 = arith.constant 0 : i32
    %c0_i32_1 = arith.constant 0 : i32
    return %arg0, %c0_i32, %c0_i32_0 : i32, i32, i32
  }
}

</mosaic_0001>

<llo_original>
// kernel: tpu_custom_call.1
$region0: #{tpu_custom_call.1}
  #allocation0 [shape = 'u32[]', space=smem, size = 0x4, offset = 0x4, fixed_abs, tag = 'smem constant byte address 0x4 - core index']
  #allocation1 [shape = 'u32[144,128]{1,0:T(1,128)}', space=vmem, size = 0x12000, scoped, tag = 'internal scratch']
  %s0 = inlined_call_operand.hbm [shape: f32[2,16,128], index: 0, kind: input, shape index: {}]
  %s1 = inlined_call_operand.hbm [shape: f32[1,8,128], index: 1, kind: output, shape index: {}]
  %s2 = sld [smem:[#allocation0]]
  $region18: #{tpu_custom_call.1} parent=0
    _
  %s4 = ssub.s32 1, %s2
  %s5 = scalar_select 0, %s4, %s2
  $region1: #{tpu_custom_call.1} parent=0
    #allocation2 [shape = 'u8[16384]{0}', space=vmem, size = 0x4000, scoped, tag = 'input window, operand 0, single buffered']
    #allocation3 [shape = 's32[1]{0}', space=sflag, size = 0x4, scoped, tag = 'scoped memory for tpu_custom_call.1']
    #allocation4 [shape = 's32[1]{0}', space=sflag, size = 0x4, scoped, tag = 'scoped memory for tpu_custom_call.1']
    #allocation5 [shape = 'u8[4096]{0}', space=vmem, size = 0x1000, scoped, tag = 'output window, operand 0, single buffered']
    %6 = vsyncpa [#allocation3], 0
    %7 = vsyncpa [#allocation4], 0
    // Predicated region
    $region2: #{tpu_custom_call.1} parent=1 // pred_check
      _
    $region3: #{tpu_custom_call.1} parent=1 // pred_check_branch
      %9 = sbr.rel (0) target = $region5
    $region4: #{tpu_custom_call.1} parent=1 // pred_region
      %s11 = ssub.s32 512, 512
      %12 = vsyncadd [#allocation3], %s11
      %s13 = sshll.u32 [#allocation2], 4
      %s14 = int_to_ptr.vmem [resolvable:$true] %s13
      %19 = dma.hbm_to_vmem [thread:$0]  %s0, 512, %s14, [#allocation3], 128, 128, 8
    $region5: #{tpu_custom_call.1} parent=1 // pred_fallthru
      _
    // Predicated region
    $region6: #{tpu_custom_call.1} parent=1 // pred_check
      _
    $region7: #{tpu_custom_call.1} parent=1 // pred_check_branch
      %21 = sbr.rel (0) target = $region9
    $region8: #{tpu_custom_call.1} parent=1 // pred_region
      %22 = dma.done [#allocation3], 512
    $region9: #{tpu_custom_call.1} parent=1 // pred_fallthru
      _
    %v23 = vld [vmem:[#allocation2] sm:$0xff]
    %v24 = vld [vmem:[#allocation2 + $0x8] sm:$0xff]
    %v25 = vld [vmem:[#allocation2 + $0x10] sm:$0xff]
    %v26 = vld [vmem:[#allocation2 + $0x18] sm:$0xff]
    %v27 = vadd.f32 %v23, %v25
    %v28 = vadd.f32 %v24, %v26
    %v29 = vmul.f32 %v23, %v23
    %v30 = vmul.f32 %v24, %v24
    %v31 = vmul.f32 %v25, %v25
    %v32 = vmul.f32 %v26, %v26
    %v33 = vadd.f32 %v29, %v31
    %v34 = vadd.f32 %v30, %v32
    %v35 = vmul.f32 %v33, -0.5
    %v36 = vmul.f32 %v34, -0.5
    %v37 = vmul.f32 %v27, %v27
    %v38 = vmul.f32 %v28, %v28
    %v39 = vmul.f32 %v37, 0.125
    %v40 = vmul.f32 %v38, 0.125
    %v41 = vadd.f32 %v35, %v39
    %v42 = vadd.f32 %v36, %v40
    %v43 = vadd.f32 %v41, %v42
    %44 = vst [vmem:[#allocation5] sm:$0xff] %v43
    // Predicated region
    $region10: #{tpu_custom_call.1} parent=1 // pred_check
      _
    $region11: #{tpu_custom_call.1} parent=1 // pred_check_branch
      %46 = sbr.rel (0) target = $region13
    $region12: #{tpu_custom_call.1} parent=1 // pred_region
      %s48 = ssub.s32 128, 128
      %49 = vsyncadd [#allocation4], %s48
      %s51 = sshll.u32 [#allocation5], 4
      %s52 = int_to_ptr.vmem [resolvable:$true] %s51
      %54 = dma.vmem_to_hbm [thread:$0]  %s52, 128, %s1, [#allocation4]
    $region13: #{tpu_custom_call.1} parent=1 // pred_fallthru
      _
    // Predicated region
    $region14: #{tpu_custom_call.1} parent=1 // pred_check
      _
    $region15: #{tpu_custom_call.1} parent=1 // pred_check_branch
      %56 = sbr.rel (0) target = $region17
    $region16: #{tpu_custom_call.1} parent=1 // pred_region
      %57 = dma.done [#allocation4], 128
    $region17: #{tpu_custom_call.1} parent=1 // pred_fallthru
      _
    %58 = vsyncpa [#allocation3], 1
    %59 = vsyncpa [#allocation4], 1

</llo_original>
